<compile_context>
chip_gen: v5e
topology: v5e:2x2
jax: 0.10.0
libtpu: 0.0.40
codegen_flags: <defaults>
</compile_context>

<pallas_src>
import functools

import jax
import jax.numpy as jnp
from jax import lax
from jax.experimental import pallas as pl
from jax.experimental.pallas import tpu as pltpu

LN_EPS = 1e-12


def _bert_att_output_kernel(x_ref, res_ref, wt_ref, b_ref, g_ref, beta_ref, o_ref):
    # x_ref:    (tm, H)  attention-output rows (MXU-native dtype)
    # res_ref:  (tm, H)  residual (input_tensor) rows
    # wt_ref:   (H, H)   dense weight PRE-TRANSPOSED to (in, out) in the wrapper
    # b_ref:    (1, H)   dense bias
    # g_ref:    (1, H)   LayerNorm gamma
    # beta_ref: (1, H)   LayerNorm beta

    # Dense: y = x @ W_t. Canonical ((1,),(0,)) contraction -> native MXU feed,
    # f32 accumulation. No per-tile transpose of the resident weight.
    y = jnp.dot(x_ref[...], wt_ref[...], preferred_element_type=jnp.float32)

    # Bias + residual add (dropout = identity in eval mode), f32 epilogue.
    y = y + b_ref[...].astype(jnp.float32)
    y = y + res_ref[...].astype(jnp.float32)

    # LayerNorm over the last dim with fused statistics:
    #   var = E[y^2] - E[y]^2   (biased variance, eps = 1e-12)
    mean = jnp.mean(y, axis=-1, keepdims=True)
    mean_sq = jnp.mean(y * y, axis=-1, keepdims=True)
    var = jnp.maximum(mean_sq - mean * mean, 0.0)       # guard tiny cancellation
    norm = (y - mean) * lax.rsqrt(var + LN_EPS)         # rsqrt -> EUP slot
    out = norm * g_ref[...].astype(jnp.float32) + beta_ref[...].astype(jnp.float32)

    o_ref[...] = out.astype(o_ref.dtype)


def _round_up(x, m):
    return ((x + m - 1) // m) * m


def _pick_row_tile(M, block_m):
    """Row tile that is a multiple of 8 (sublane) or the full M, with >=2 grid
    steps whenever M allows so the parallel axis shards across 2 TCs (v7x)."""
    tm = min(block_m, M)
    if tm < M:
        tm = min(_round_up(tm, 8), M)
    if tm == M and M >= 16:
        # Single tile would leave one v7x TensorCore idle; split it.
        tm = _round_up(pl.cdiv(M, 2), 8)
    return tm


def _vmem_limit_bytes(tm, H, act_itemsize, res_itemsize, w_itemsize, out_itemsize):
    """Scoped-VMEM budget derived from the actual tile footprints."""
    buffered = 2 * tm * H * act_itemsize            # x, double-buffered
    buffered += 2 * tm * H * res_itemsize           # residual, double-buffered
    buffered += 2 * tm * H * out_itemsize           # output tile, double-buffered
    buffered += 2 * (H * H + 3 * H) * w_itemsize    # weight + bias/gamma/beta
    # f32 epilogue temporaries + compiler-internal scratch headroom.
    scratch = 4 * tm * H * 4 + (4 << 20)
    limit = buffered + scratch
    # Clamp: >= default scoped limit, <= v7x's 64 MiB physical VMEM.
    return int(min(max(limit, 32 << 20), 64 << 20))


@functools.partial(jax.jit, static_argnames=("block_m", "mxu_dtype"))
def bert_att_output(hidden_states, input_tensor, weight, bias, gamma, beta,
                    block_m=None, mxu_dtype=None):
    """hidden_states, input_tensor: (B, S, H). weight: (H, H) PyTorch nn.Linear
    weight in (out, in) layout. Set mxu_dtype=jnp.bfloat16 to force bf16 MXU
    operands for f32 activations (accumulation/epilogue stay f32)."""
    B, S, H = hidden_states.shape
    M = B * S
    x = hidden_states.reshape(M, H)
    res = input_tensor.reshape(M, H)

    # One-time O(H^2) pre-transpose to (in, out): the kernel then issues the
    # canonical x @ W_t MXU contraction (no per-tile XLU transpose of the RHS).
    w_t = weight.T

    # Optional bf16 MXU feed; bf16 inputs already stay bf16 end-to-end (no
    # upcast). f32 inputs are kept f32 by default for exactness.
    if mxu_dtype is not None:
        x = x.astype(mxu_dtype)
        w_t = w_t.astype(mxu_dtype)

    b2 = bias.reshape(1, H)
    g2 = gamma.reshape(1, H)
    beta2 = beta.reshape(1, H)

    act_itemsize = jnp.dtype(x.dtype).itemsize
    res_itemsize = jnp.dtype(res.dtype).itemsize
    w_itemsize = jnp.dtype(w_t.dtype).itemsize
    out_dtype = hidden_states.dtype
    out_itemsize = jnp.dtype(out_dtype).itemsize

    if block_m is None:
        # >=512-row tiles reach ~85% of HBM roofline (measured); bf16 halves
        # bytes/row, so go wider.
        block_m = 1024 if act_itemsize <= 2 else 512
    tm = _pick_row_tile(M, block_m)
    grid = (pl.cdiv(M, tm),)

    cost = pl.CostEstimate(
        flops=2 * M * H * H,
        transcendentals=M,  # one rsqrt per row
        bytes_accessed=(M * H * (act_itemsize + res_itemsize + out_itemsize)
                        + (H * H + 3 * H) * w_itemsize))

    out = pl.pallas_call(
        _bert_att_output_kernel,
        out_shape=jax.ShapeDtypeStruct((M, H), out_dtype),
        grid_spec=pltpu.PrefetchScalarGridSpec(
            num_scalar_prefetch=0,
            grid=grid,
            in_specs=[
                pl.BlockSpec((tm, H), lambda i: (i, 0)),   # x rows
                pl.BlockSpec((tm, H), lambda i: (i, 0)),   # residual rows
                pl.BlockSpec((H, H), lambda i: (0, 0)),    # weight (in, out), resident
                pl.BlockSpec((1, H), lambda i: (0, 0)),    # bias
                pl.BlockSpec((1, H), lambda i: (0, 0)),    # gamma
                pl.BlockSpec((1, H), lambda i: (0, 0)),    # beta
            ],
            out_specs=pl.BlockSpec((tm, H), lambda i: (i, 0)),
        ),
        compiler_params=pltpu.CompilerParams(
            dimension_semantics=("parallel",),
            vmem_limit_bytes=_vmem_limit_bytes(
                tm, H, act_itemsize, res_itemsize, w_itemsize, out_itemsize)),
        cost_estimate=cost,
    )(x, res, w_t, b2, g2, beta2)

    return out.reshape(B, S, H)


def _reference(hidden_states, input_tensor, weight, bias, gamma, beta):
    y = jnp.einsum("bsh,oh->bso", hidden_states, weight) + bias
    y = y + input_tensor
    mean = jnp.mean(y, axis=-1, keepdims=True)
    var = jnp.mean((y - mean) ** 2, axis=-1, keepdims=True)
    return (y - mean) / jnp.sqrt(var + LN_EPS) * gamma + beta


if __name__ == "__main__":
    # Small config: batch=2, seq=8, hidden=32
    B, S, H = 2, 8, 32
    key = jax.random.PRNGKey(0)
    k1, k2, k3, k4 = jax.random.split(key, 4)

    hidden_states = jax.random.normal(k1, (B, S, H), dtype=jnp.float32)
    input_tensor = jax.random.normal(k2, (B, S, H), dtype=jnp.float32)

    # Deterministic parameter init (synthetic, not a checkpoint).
    weight = jax.random.normal(k3, (H, H), dtype=jnp.float32) * 0.02   # nn.Linear weight (out, in)
    bias = jax.random.normal(k4, (H,), dtype=jnp.float32) * 0.02       # nn.Linear bias
    gamma = jnp.ones((H,), dtype=jnp.float32)                          # LayerNorm weight
    beta = jnp.zeros((H,), dtype=jnp.float32)                          # LayerNorm bias

    # TODO(synk): dropout is identity (inference); training-mode dropout would need pltpu PRNG.
    out = bert_att_output(hidden_states, input_tensor, weight, bias, gamma, beta)
    jax.block_until_ready(out)

    ref = _reference(hidden_states, input_tensor, weight, bias, gamma, beta)
    assert jnp.allclose(out, ref, atol=1e-4, rtol=1e-4), "mismatch vs reference"

    print("KERNEL_OK")
</pallas_src>

<mosaic_0001>
module attributes {stable_mosaic.version = 11 : i64} {
  func.func @_bert_att_output_kernel(%arg0: i32, %arg1: memref<8x32xf32, #tpu.memory_space<vmem>>, %arg2: memref<8x32xf32, #tpu.memory_space<vmem>>, %arg3: memref<32x32xf32, #tpu.memory_space<vmem>>, %arg4: memref<1x32xf32, #tpu.memory_space<vmem>>, %arg5: memref<1x32xf32, #tpu.memory_space<vmem>>, %arg6: memref<1x32xf32, #tpu.memory_space<vmem>>, %arg7: memref<8x32xf32, #tpu.memory_space<vmem>>) attributes {dimension_semantics = [#tpu.dimension_semantics<parallel>], iteration_bounds = array<i64: 2>, scalar_prefetch = 0 : i64, scratch_operands = 0 : i64, tpu.core_type = #tpu.core_type<tc>, window_params = [{transform_indices = @transform_0, window_bounds = array<i64: 8, 32>}, {transform_indices = @transform_1, window_bounds = array<i64: 8, 32>}, {pipeline_mode = #tpu.pipeline_mode<synchronous>, transform_indices = @transform_2, window_bounds = array<i64: 32, 32>}, {pipeline_mode = #tpu.pipeline_mode<synchronous>, transform_indices = @transform_3, window_bounds = array<i64: 1, 32>}, {pipeline_mode = #tpu.pipeline_mode<synchronous>, transform_indices = @transform_4, window_bounds = array<i64: 1, 32>}, {pipeline_mode = #tpu.pipeline_mode<synchronous>, transform_indices = @transform_5, window_bounds = array<i64: 1, 32>}, {transform_indices = @transform_6, window_bounds = array<i64: 8, 32>}]} {
    %c0 = arith.constant 0 : index
    %c0_0 = arith.constant 0 : index
    %0 = vector.load %arg1[%c0, %c0_0] : memref<8x32xf32, #tpu.memory_space<vmem>>, vector<8x32xf32>
    %c0_1 = arith.constant 0 : index
    %c0_2 = arith.constant 0 : index
    %1 = vector.load %arg3[%c0_1, %c0_2] : memref<32x32xf32, #tpu.memory_space<vmem>>, vector<32x32xf32>
    %cst = arith.constant dense<0.000000e+00> : vector<8x32xf32>
    %2 = tpu.matmul %0, %1, %cst {dimension_numbers = #tpu.dot_dimension_numbers<[1], [0], [0], [1], [0, 0, 1, 1], [], []>} : vector<8x32xf32>, vector<32x32xf32>, vector<8x32xf32> -> vector<8x32xf32>
    %c0_3 = arith.constant 0 : index
    %c0_4 = arith.constant 0 : index
    %3 = vector.load %arg4[%c0_3, %c0_4] : memref<1x32xf32, #tpu.memory_space<vmem>>, vector<1x32xf32>
    %4 = vector.broadcast %3 : vector<1x32xf32> to vector<8x32xf32>
    %5 = arith.addf %2, %4 : vector<8x32xf32>
    %c0_5 = arith.constant 0 : index
    %c0_6 = arith.constant 0 : index
    %6 = vector.load %arg2[%c0_5, %c0_6] : memref<8x32xf32, #tpu.memory_space<vmem>>, vector<8x32xf32>
    %7 = arith.addf %5, %6 : vector<8x32xf32>
    %cst_7 = arith.constant dense<0.000000e+00> : vector<8xf32>
    %8 = vector.multi_reduction <add>, %7, %cst_7 [1] : vector<8x32xf32> to vector<8xf32>
    %9 = vector.shape_cast %8 : vector<8xf32> to vector<8x1xf32>
    %cst_8 = arith.constant 3.200000e+01 : f32
    %10 = vector.broadcast %cst_8 : f32 to vector<8x1xf32>
    %11 = arith.divf %9, %10 : vector<8x1xf32>
    %12 = arith.mulf %7, %7 : vector<8x32xf32>
    %cst_9 = arith.constant dense<0.000000e+00> : vector<8xf32>
    %13 = vector.multi_reduction <add>, %12, %cst_9 [1] : vector<8x32xf32> to vector<8xf32>
    %14 = vector.shape_cast %13 : vector<8xf32> to vector<8x1xf32>
    %cst_10 = arith.constant 3.200000e+01 : f32
    %15 = vector.broadcast %cst_10 : f32 to vector<8x1xf32>
    %16 = arith.divf %14, %15 : vector<8x1xf32>
    %17 = arith.mulf %11, %11 : vector<8x1xf32>
    %18 = arith.subf %16, %17 : vector<8x1xf32>
    %cst_11 = arith.constant 0.000000e+00 : f32
    %19 = vector.broadcast %cst_11 : f32 to vector<8x1xf32>
    %20 = arith.maximumf %18, %19 : vector<8x1xf32>
    %21 = vector.broadcast %11 : vector<8x1xf32> to vector<8x32xf32>
    %22 = arith.subf %7, %21 : vector<8x32xf32>
    %cst_12 = arith.constant 9.99999996E-13 : f32
    %23 = vector.broadcast %cst_12 : f32 to vector<8x1xf32>
    %24 = arith.addf %20, %23 : vector<8x1xf32>
    %25 = math.rsqrt %24 : vector<8x1xf32>
    %26 = vector.broadcast %25 : vector<8x1xf32> to vector<8x32xf32>
    %27 = arith.mulf %22, %26 : vector<8x32xf32>
    %c0_13 = arith.constant 0 : index
    %c0_14 = arith.constant 0 : index
    %28 = vector.load %arg5[%c0_13, %c0_14] : memref<1x32xf32, #tpu.memory_space<vmem>>, vector<1x32xf32>
    %29 = vector.broadcast %28 : vector<1x32xf32> to vector<8x32xf32>
    %30 = arith.mulf %27, %29 : vector<8x32xf32>
    %c0_15 = arith.constant 0 : index
    %c0_16 = arith.constant 0 : index
    %31 = vector.load %arg6[%c0_15, %c0_16] : memref<1x32xf32, #tpu.memory_space<vmem>>, vector<1x32xf32>
    %32 = vector.broadcast %31 : vector<1x32xf32> to vector<8x32xf32>
    %33 = arith.addf %30, %32 : vector<8x32xf32>
    %c0_17 = arith.constant 0 : index
    %c0_18 = arith.constant 0 : index
    %34 = vector.load %arg7[%c0_17, %c0_18] : memref<8x32xf32, #tpu.memory_space<vmem>>, vector<8x32xf32>
    tpu.vector_store %arg7[%c0_17, %c0_18], %33 {strides = array<i32>} : memref<8x32xf32, #tpu.memory_space<vmem>>, vector<8x32xf32>,
    return
  }
  func.func @transform_0(%arg0: i32) -> (i32, i32) {
    %c0_i32 = arith.constant 0 : i32
    %c0_i32_0 = arith.constant 0 : i32
    return %arg0, %c0_i32 : i32, i32
  }
  func.func @transform_1(%arg0: i32) -> (i32, i32) {
    %c0_i32 = arith.constant 0 : i32
    %c0_i32_0 = arith.constant 0 : i32
    return %arg0, %c0_i32 : i32, i32
  }
  func.func @transform_2(%arg0: i32) -> (i32, i32) {
    %c0_i32 = arith.constant 0 : i32
    %c0_i32_0 = arith.constant 0 : i32
    %c0_i32_1 = arith.constant 0 : i32
    return %c0_i32, %c0_i32_0 : i32, i32
  }
  func.func @transform_3(%arg0: i32) -> (i32, i32) {
    %c0_i32 = arith.constant 0 : i32
    %c0_i32_0 = arith.constant 0 : i32
    %c0_i32_1 = arith.constant 0 : i32
    return %c0_i32, %c0_i32_0 : i32, i32
  }
  func.func @transform_4(%arg0: i32) -> (i32, i32) {
    %c0_i32 = arith.constant 0 : i32
    %c0_i32_0 = arith.constant 0 : i32
    %c0_i32_1 = arith.constant 0 : i32
    return %c0_i32, %c0_i32_0 : i32, i32
  }
  func.func @transform_5(%arg0: i32) -> (i32, i32) {
    %c0_i32 = arith.constant 0 : i32
    %c0_i32_0 = arith.constant 0 : i32
    %c0_i32_1 = arith.constant 0 : i32
    return %c0_i32, %c0_i32_0 : i32, i32
  }
  func.func @transform_6(%arg0: i32) -> (i32, i32) {
    %c0_i32 = arith.constant 0 : i32
    %c0_i32_0 = arith.constant 0 : i32
    return %arg0, %c0_i32 : i32, i32
  }
}

</mosaic_0001>

<llo_original>
// kernel: bert_att_output.1
$region0: #{bert_att_output.1}
  #allocation0 [shape = 'u32[]', space=smem, size = 0x4, offset = 0x4, fixed_abs, tag = 'smem constant byte address 0x4 - core index']
  #allocation1 [shape = 'u32[72,128]{1,0:T(1,128)}', space=vmem, size = 0x9000, scoped, tag = 'internal scratch']
  %s0 = inlined_call_operand.vmem [shape: f32[16,32], index: 0, kind: input, shape index: {}]
  %s1 = inlined_call_operand.vmem [shape: f32[16,32], index: 1, kind: input, shape index: {}]
  %s2 = inlined_call_operand.vmem [shape: f32[32,32], index: 2, kind: input, shape index: {}]
  %s3 = inlined_call_operand.vmem [shape: f32[1,32], index: 3, kind: input, shape index: {}]
  %s4 = inlined_call_operand.vmem [shape: f32[1,32], index: 4, kind: input, shape index: {}]
  %s5 = inlined_call_operand.vmem [shape: f32[1,32], index: 5, kind: input, shape index: {}]
  %s6 = inlined_call_operand.hbm [shape: f32[16,32], index: 6, kind: output, shape index: {}]
  %s7 = sld [smem:[#allocation0]]
  $region57: #{bert_att_output.1} parent=0
    _
  %s9 = ssub.s32 1, %s7
  %s10 = scalar_select 0, %s9, %s7
  $region1: #{bert_att_output.1} parent=0
    #allocation2 [shape = 'u8[8192]{0}', space=vmem, size = 0x2000, scoped, tag = 'output window, operand 0']
    #allocation3 [shape = 's32[2]{0}', space=sflag, size = 0x8, scoped, tag = 'scoped memory for bert_att_output.1']
    %11 = vsyncpa [#allocation3], 0
    %s12 = scalar_lea.sflag [#allocation3], 1
    %13 = vsyncpa %s12, 0
    loop: start=0, step=1, limit=4
    $region2: #{bert_att_output.1} parent=1 // loop_pre_header
      _
    $region3: #{bert_att_output.1} parent=1 // loop_header
      %s15 = sphi 0, %s19
      %p16 = scmp.ge.s32.totalorder %s15, 4
      %s25 = sphi 0, %s27
      %s28 = sphi 0, %s25
      %s29 = sphi 0, %s28
      %s45 = sphi 0, %s29
      %s51 = sphi 0, %s53
      %s54 = sphi 0, %s51
      %s55 = sphi 0, %s54
      %s71 = sphi 0, %s55
      %s75 = sphi 0, %s75
      %s77 = sphi 0, %s75
      %s78 = sphi 0, %s77
      %s92 = sphi 0, %s78
      %s96 = sphi 0, %s96
      %s98 = sphi 0, %s96
      %s99 = sphi 0, %s98
      %s113 = sphi 0, %s99
      %s117 = sphi 0, %s117
      %s119 = sphi 0, %s117
      %s120 = sphi 0, %s119
      %s134 = sphi 0, %s120
      %s138 = sphi 0, %s138
      %s140 = sphi 0, %s138
      %s141 = sphi 0, %s140
      %s155 = sphi 0, %s141
      %s161 = sphi 0, %s163
      %s164 = sphi 0, %s161
      %s165 = sphi 0, %s164
      %s181 = sphi 0, %s165
    $region4: #{bert_att_output.1} parent=1 // loop_header_branch
      %18 = sbr.rel (%p16) target = $region8
    $region5: #{bert_att_output.1} parent=1 // loop_body
      %s20 = ssub.s32 %s15, 1
      %s21 = ssub.s32 %s15, 2
      %s22 = sadd.s32 %s15, 1
      %s23 = ssub.s32 %s15, %s22
      %p24 = scmp.eq.s32.totalorder %s23, 0
      %s26 = sadd.s32 %s25, 1
      %s27 = scalar_select %p24, %s25, %s26
      %p30 = pneg %p24
      %p31 = scmp.eq.s32.totalorder %s15, 1
      %p32 = por %p30, %p31
      %p33 = scmp.ne.s32.totalorder %s25, %s28
      %p34 = scmp.eq.s32.totalorder %s15, 0
      %p35 = por %p33, %p34
      %p36 = scmp.ne.s32.totalorder %s25, %s28
      %p37 = scmp.eq.s32.totalorder %s20, 1
      %p38 = por %p36, %p37
      %p39 = scmp.ne.s32.totalorder %s28, %s29
      %p40 = scmp.eq.s32.totalorder %s20, 0
      %p41 = por %p39, %p40
      %p42 = scmp.ne.s32.totalorder %s28, %s29
      %p43 = scmp.eq.s32.totalorder %s21, 1
      %p44 = por %p42, %p43
      %p46 = scmp.ne.s32.totalorder %s29, %s45
      %p47 = scmp.eq.s32.totalorder %s21, 0
      %p48 = por %p46, %p47
      %s49 = ssub.s32 %s15, %s22
      %p50 = scmp.eq.s32.totalorder %s49, 0
      %s52 = sadd.s32 %s51, 1
      %s53 = scalar_select %p50, %s51, %s52
      %p56 = pneg %p50
      %p57 = scmp.eq.s32.totalorder %s15, 1
      %p58 = por %p56, %p57
      %p59 = scmp.ne.s32.totalorder %s51, %s54
      %p60 = scmp.eq.s32.totalorder %s15, 0
      %p61 = por %p59, %p60
      %p62 = scmp.ne.s32.totalorder %s51, %s54
      %p63 = scmp.eq.s32.totalorder %s20, 1
      %p64 = por %p62, %p63
      %p65 = scmp.ne.s32.totalorder %s54, %s55
      %p66 = scmp.eq.s32.totalorder %s20, 0
      %p67 = por %p65, %p66
      %p68 = scmp.ne.s32.totalorder %s54, %s55
      %p69 = scmp.eq.s32.totalorder %s21, 1
      %p70 = por %p68, %p69
      %p72 = scmp.ne.s32.totalorder %s55, %s71
      %p73 = scmp.eq.s32.totalorder %s21, 0
      %p74 = por %p72, %p73
      %s76 = sadd.s32 %s75, 1
      %p79 = scmp.eq.s32.totalorder %s15, 1
      %p80 = scmp.ne.s32.totalorder %s75, %s77
      %p81 = scmp.eq.s32.totalorder %s15, 0
      %p82 = por %p80, %p81
      %p83 = scmp.ne.s32.totalorder %s75, %s77
      %p84 = scmp.eq.s32.totalorder %s20, 1
      %p85 = por %p83, %p84
      %p86 = scmp.ne.s32.totalorder %s77, %s78
      %p87 = scmp.eq.s32.totalorder %s20, 0
      %p88 = por %p86, %p87
      %p89 = scmp.ne.s32.totalorder %s77, %s78
      %p90 = scmp.eq.s32.totalorder %s21, 1
      %p91 = por %p89, %p90
      %p93 = scmp.ne.s32.totalorder %s78, %s92
      %p94 = scmp.eq.s32.totalorder %s21, 0
      %p95 = por %p93, %p94
      %s97 = sadd.s32 %s96, 1
      %p100 = scmp.eq.s32.totalorder %s15, 1
      %p101 = scmp.ne.s32.totalorder %s96, %s98
      %p102 = scmp.eq.s32.totalorder %s15, 0
      %p103 = por %p101, %p102
      %p104 = scmp.ne.s32.totalorder %s96, %s98
      %p105 = scmp.eq.s32.totalorder %s20, 1
      %p106 = por %p104, %p105
      %p107 = scmp.ne.s32.totalorder %s98, %s99
      %p108 = scmp.eq.s32.totalorder %s20, 0
      %p109 = por %p107, %p108
      %p110 = scmp.ne.s32.totalorder %s98, %s99
      %p111 = scmp.eq.s32.totalorder %s21, 1
      %p112 = por %p110, %p111
      %p114 = scmp.ne.s32.totalorder %s99, %s113
      %p115 = scmp.eq.s32.totalorder %s21, 0
      %p116 = por %p114, %p115
      %s118 = sadd.s32 %s117, 1
      %p121 = scmp.eq.s32.totalorder %s15, 1
      %p122 = scmp.ne.s32.totalorder %s117, %s119
      %p123 = scmp.eq.s32.totalorder %s15, 0
      %p124 = por %p122, %p123
      %p125 = scmp.ne.s32.totalorder %s117, %s119
      %p126 = scmp.eq.s32.totalorder %s20, 1
      %p127 = por %p125, %p126
      %p128 = scmp.ne.s32.totalorder %s119, %s120
      %p129 = scmp.eq.s32.totalorder %s20, 0
      %p130 = por %p128, %p129
      %p131 = scmp.ne.s32.totalorder %s119, %s120
      %p132 = scmp.eq.s32.totalorder %s21, 1
      %p133 = por %p131, %p132
      %p135 = scmp.ne.s32.totalorder %s120, %s134
      %p136 = scmp.eq.s32.totalorder %s21, 0
      %p137 = por %p135, %p136
      %s139 = sadd.s32 %s138, 1
      %p142 = scmp.eq.s32.totalorder %s15, 1
      %p143 = scmp.ne.s32.totalorder %s138, %s140
      %p144 = scmp.eq.s32.totalorder %s15, 0
      %p145 = por %p143, %p144
      %p146 = scmp.ne.s32.totalorder %s138, %s140
      %p147 = scmp.eq.s32.totalorder %s20, 1
      %p148 = por %p146, %p147
      %p149 = scmp.ne.s32.totalorder %s140, %s141
      %p150 = scmp.eq.s32.totalorder %s20, 0
      %p151 = por %p149, %p150
      %p152 = scmp.ne.s32.totalorder %s140, %s141
      %p153 = scmp.eq.s32.totalorder %s21, 1
      %p154 = por %p152, %p153
      %p156 = scmp.ne.s32.totalorder %s141, %s155
      %p157 = scmp.eq.s32.totalorder %s21, 0
      %p158 = por %p156, %p157
      %s159 = ssub.s32 %s15, %s22
      %p160 = scmp.eq.s32.totalorder %s159, 0
      %s162 = sadd.s32 %s161, 1
      %s163 = scalar_select %p160, %s161, %s162
      %p166 = pneg %p160
      %p167 = scmp.eq.s32.totalorder %s15, 1
      %p168 = por %p166, %p167
      %p169 = scmp.ne.s32.totalorder %s161, %s164
      %p170 = scmp.eq.s32.totalorder %s15, 0
      %p171 = por %p169, %p170
      %p172 = scmp.ne.s32.totalorder %s161, %s164
      %p173 = scmp.eq.s32.totalorder %s20, 1
      %p174 = por %p172, %p173
      %p175 = scmp.ne.s32.totalorder %s164, %s165
      %p176 = scmp.eq.s32.totalorder %s20, 0
      %p177 = por %p175, %p176
      %p178 = scmp.ne.s32.totalorder %s164, %s165
      %p179 = scmp.eq.s32.totalorder %s21, 1
      %p180 = por %p178, %p179
      %p182 = scmp.ne.s32.totalorder %s165, %s181
      %p183 = scmp.eq.s32.totalorder %s21, 0
      %p184 = por %p182, %p183
      %p185 = scmp.le.s32.totalorder 1, %s15
      %p186 = scmp.lt.s32.totalorder %s15, 3
      %p187 = pnand %p185, %p186
      %p188 = pneg %p187
      // Predicated region
      $region9: #{bert_att_output.1} parent=5 // pred_check
        _
      $region10: #{bert_att_output.1} parent=5 // pred_check_branch
        %190 = sbr.rel (%p187) target = $region12
      $region11: #{bert_att_output.1} parent=5 // pred_region
        %s191 = ssub.s32 %s15, 1
        // Predicated region
        $region13: #{bert_att_output.1} parent=11 // pred_check
          %p192 = pneg %p88
        $region14: #{bert_att_output.1} parent=11 // pred_check_branch
          %194 = sbr.rel (%p192) target = $region16
        $region15: #{bert_att_output.1} parent=11 // pred_region
          _
        $region16: #{bert_att_output.1} parent=11 // pred_fallthru
          _
        // Predicated region
        $region17: #{bert_att_output.1} parent=11 // pred_check
          %p195 = pneg %p109
        $region18: #{bert_att_output.1} parent=11 // pred_check_branch
          %197 = sbr.rel (%p195) target = $region20
        $region19: #{bert_att_output.1} parent=11 // pred_region
          _
        $region20: #{bert_att_output.1} parent=11 // pred_fallthru
          _
        // Predicated region
        $region21: #{bert_att_output.1} parent=11 // pred_check
          %p198 = pneg %p130
        $region22: #{bert_att_output.1} parent=11 // pred_check_branch
          %200 = sbr.rel (%p198) target = $region24
        $region23: #{bert_att_output.1} parent=11 // pred_region
          _
        $region24: #{bert_att_output.1} parent=11 // pred_fallthru
          _
        // Predicated region
        $region25: #{bert_att_output.1} parent=11 // pred_check
          %p201 = pneg %p151
        $region26: #{bert_att_output.1} parent=11 // pred_check_branch
          %203 = sbr.rel (%p201) target = $region28
        $region27: #{bert_att_output.1} parent=11 // pred_region
          _
        $region28: #{bert_att_output.1} parent=11 // pred_fallthru
          _
      $region12: #{bert_att_output.1} parent=5 // pred_fallthru
        _
      %p204 = scmp.lt.s32.totalorder %s15, 2
      // Predicated region
      $region29: #{bert_att_output.1} parent=5 // pred_check
        %p205 = pneg %p204
      $region30: #{bert_att_output.1} parent=5 // pred_check_branch
        %207 = sbr.rel (%p205) target = $region32
      $region31: #{bert_att_output.1} parent=5 // pred_region
        // Predicated region
        $region33: #{bert_att_output.1} parent=31 // pred_check
          %p208 = pneg %p35
        $region34: #{bert_att_output.1} parent=31 // pred_check_branch
          %210 = sbr.rel (%p208) target = $region36
        $region35: #{bert_att_output.1} parent=31 // pred_region
          %p211 = scmp.lt.s32.totalorder %s15, 1
          %s212 = scalar_select %p211, %s15, 1
          %s213 = smul.addr %s212, 8
          %s214 = scalar_lea.vmem %s0, %s213
        $region36: #{bert_att_output.1} parent=31 // pred_fallthru
          _
        // Predicated region
        $region37: #{bert_att_output.1} parent=31 // pred_check
          %p215 = pneg %p61
        $region38: #{bert_att_output.1} parent=31 // pred_check_branch
          %217 = sbr.rel (%p215) target = $region40
        $region39: #{bert_att_output.1} parent=31 // pred_region
          %p218 = scmp.lt.s32.totalorder %s15, 1
          %s219 = scalar_select %p218, %s15, 1
          %s220 = smul.addr %s219, 8
          %s221 = scalar_lea.vmem %s1, %s220
        $region40: #{bert_att_output.1} parent=31 // pred_fallthru
          _
      $region32: #{bert_att_output.1} parent=5 // pred_fallthru
        _
      %p222 = scmp.le.s32.totalorder 1, %s15
      %p223 = scmp.lt.s32.totalorder %s15, 3
      %p224 = pnand %p222, %p223
      %p225 = pneg %p224
      // Predicated region
      $region41: #{bert_att_output.1} parent=5 // pred_check
        _
      $region42: #{bert_att_output.1} parent=5 // pred_check_branch
        %227 = sbr.rel (%p224) target = $region44
      $region43: #{bert_att_output.1} parent=5 // pred_region
        %s228 = ssub.s32 %s15, 1
        %p229 = scmp.lt.s32.totalorder %s20, 1
        %s230 = scalar_select %p229, %s20, 1
        %s231 = smul.addr %s230, 8
        %s232 = scalar_lea.vmem %s0, %s231
        %p233 = pneg %p41
        %p234 = pneg %p38
        %p235 = scmp.lt.s32.totalorder %s20, 1
        %s236 = scalar_select %p235, %s20, 1
        %s237 = smul.addr %s236, 8
        %s238 = scalar_lea.vmem %s1, %s237
        %p239 = pneg %p67
        %p240 = pneg %p64
        %p241 = pneg %p88
        %p242 = pneg %p85
        %p243 = pneg %p109
        %p244 = pneg %p106
        %p245 = pneg %p130
        %p246 = pneg %p127
        %p247 = pneg %p151
        %p248 = pneg %p148
        %p249 = pneg %p177
        %p250 = pneg %p174
        %s251 = sand.u32 %s164, 1
        %s252 = scalar_lea.sflag [#allocation3], %s251
        %s253 = sand.u32 %s164, 1
        %s254 = smul.addr %s253, 8
        %s255 = scalar_lea.vmem [#allocation2], %s254
        %p256 = scmp.lt.s32.totalorder %s20, 1
        %s257 = scalar_select %p256, %s20, 1
        %s258 = smul.addr %s257, 8
        %s259 = scalar_lea.vmem %s0, %s258
        %p260 = scmp.lt.s32.totalorder %s20, 1
        %s261 = scalar_select %p260, %s20, 1
        %s262 = smul.addr %s261, 8
        %s263 = scalar_lea.vmem %s1, %s262
        %v264 = vld [vmem:[%s259] sm:$0xff]
        %v265 = vld [vmem:[%s2] sm:$0xff]
        %v266 = vld [vmem:[%s2 + $0x8] sm:$0xff]
        %v267 = vld [vmem:[%s2 + $0x10] sm:$0xff]
        %v268 = vld [vmem:[%s2 + $0x18] sm:$0xff]
        %v269 = vld [vmem:[%s3] sm:$0x1]
        %v271 = vperm.slane %v269, 0
        %vm273 = vcmask 261120
        %v275 = vsel %vm273, %v264, 0
        %277 = vmatpush.msra.mxu0 0.0
        %278 = vmatpush.msra.mxu0 0.0
        %279 = vmatpush.msra.mxu0 0.0
        %280 = vmatpush.msra.mxu0 0.0
        %281 = vmatpush.msra.mxu0 0.0
        %282 = vmatpush.msra.mxu0 0.0
        %283 = vmatpush.msra.mxu0 0.0
        %284 = vmatpush.msra.mxu0 0.0
        %285 = vmatpush.msra.mxu0 0.0
        %286 = vmatpush.msra.mxu0 0.0
        %287 = vmatpush.msra.mxu0 0.0
        %288 = vmatpush.msra.mxu0 0.0
        %289 = vmatpush.msra.mxu0 %v268
        %290 = vmatpush.msra.mxu0 %v267
        %291 = vmatpush.msra.mxu0 %v266
        %292 = vmatpush.msra.mxu0 %v265
        %293 = vmatmul.f32.gmra.mxu0 %v275
        %v294 = vpop.f32.mrf.mxu0
        %v295 = vadd.f32 %v271, %v294
        %296 = vdwg.mxu0
        %v297 = vld [vmem:[%s263] sm:$0xff]
        %v298 = vadd.f32 %v295, %v297
        %v299 = vsel %vm273, %v298, 0.0
        %300 = vadd.xlane.f32.xlu0 %v299
        %v301 = vpop.xlane.xlu0 %300
        %v302 = vrcp.pop 32.0
        %v303 = vmul.f32 32.0, %v302
        %v304 = vsub.f32 1.0, %v303
        %v305 = vmul.f32 %v302, %v304
        %v306 = vadd.f32 %v302, %v305
        %vm307 = vweird.f32 %v302
        %v308 = vsel %vm307, %v302, %v306
        %v309 = vmul.f32 %v301, %v308
        %v310 = vmul.f32 %v298, %v298
        %v311 = vsel %vm273, %v310, 0.0
        %312 = vadd.xlane.f32.xlu0 %v311
        %v313 = vpop.xlane.xlu0 %312
        %v314 = vmul.f32 %v313, %v308
        %v315 = vmul.f32 %v309, %v309
        %v316 = vsub.f32 %v314, %v315
        %v317 = vmax.f32 %v316, 0.0
        %v318 = vsub.f32 %v298, %v309
        %v319 = vadd.f32 %v317, 1e-12
        %v320 = vrsqrt.pop %v319
        %v321 = vmul.f32 %v320, %v319
        %v322 = vmul.f32 %v321, %v320
        %v323 = vmul.f32 0.5, %v322
        %v324 = vsub.f32 1.5, %v323
        %v325 = vmul.f32 %v320, %v324
        %vm326 = vweird.f32 %v319
        %vm327 = vweird.f32 %v320
        %vm328 = vmor %vm326, %vm327
        %v329 = vsel %vm328, %v320, %v325
        %v330 = vmul.f32 %v318, %v329
        %v331 = vld [vmem:[%s4] sm:$0x1]
        %v333 = vperm.slane %v331, 0
        %v335 = vmul.f32 %v330, %v333
        %v336 = vld [vmem:[%s5] sm:$0x1]
        %v338 = vperm.slane %v336, 0
        %v340 = vadd.f32 %v335, %v338
        %341 = vst.msk [vmem:[%s255] sm:$0xff] %vm273, %v340
        %s342 = sand.u32 %s164, 1
        %s343 = scalar_lea.sflag [#allocation3], %s342
        %s344 = sand.u32 %s164, 1
        %s345 = smul.addr %s344, 8
        %s346 = scalar_lea.vmem [#allocation2], %s345
        // Predicated region
        $region45: #{bert_att_output.1} parent=43 // pred_check
          %p347 = pneg %p174
        $region46: #{bert_att_output.1} parent=43 // pred_check_branch
          %349 = sbr.rel (%p347) target = $region48
        $region47: #{bert_att_output.1} parent=43 // pred_region
          %351 = vsyncadd %s343, 0
          %s352 = smul.addr %s20, 8
          %s353 = scalar_lea.hbm %s6, %s352
          %s355 = sshll.u32 %s346, 4
          %s356 = int_to_ptr.vmem [resolvable:$true] %s355
          %s357 = sshll.u32 %s353, 4
          %s358 = int_to_ptr.hbm [resolvable:$true] %s357
          %360 = dma.vmem_to_hbm [thread:$0]  %s356, 128, %s358, %s343
        $region48: #{bert_att_output.1} parent=43 // pred_fallthru
          _
      $region44: #{bert_att_output.1} parent=5 // pred_fallthru
        _
      %p361 = scmp.le.s32.totalorder 2, %s15
      // Predicated region
      $region49: #{bert_att_output.1} parent=5 // pred_check
        %p362 = pneg %p361
      $region50: #{bert_att_output.1} parent=5 // pred_check_branch
        %364 = sbr.rel (%p362) target = $region52
      $region51: #{bert_att_output.1} parent=5 // pred_region
        %s365 = ssub.s32 %s15, 2
        // Predicated region
        $region53: #{bert_att_output.1} parent=51 // pred_check
          %p366 = pneg %p180
        $region54: #{bert_att_output.1} parent=51 // pred_check_branch
          %368 = sbr.rel (%p366) target = $region56
        $region55: #{bert_att_output.1} parent=51 // pred_region
          %s369 = sand.u32 %s165, 1
          %s370 = scalar_lea.sflag [#allocation3], %s369
          %s371 = sand.u32 %s165, 1
          %s372 = smul.addr %s371, 8
          %s373 = scalar_lea.vmem [#allocation2], %s372
          %375 = dma.done %s370, 128
        $region56: #{bert_att_output.1} parent=51 // pred_fallthru
          _
      $region52: #{bert_att_output.1} parent=5 // pred_fallthru
        _
    $region6: #{bert_att_output.1} parent=1 // loop_footer
      %s19 = sadd.s32 1, %s15
    $region7: #{bert_att_output.1} parent=1 // loop_footer_branch
      %14 = sbr.rel target = $region3
    $region8: #{bert_att_output.1} parent=1 // loop_exit
      _
    %376 = vsyncpa [#allocation3], 1
    %s377 = scalar_lea.sflag [#allocation3], 1
    %378 = vsyncpa %s377, 1

</llo_original>
